<compile_context>
chip_gen: v7x
topology: tpu7x:2x2x1
jax: 0.10.0
libtpu: 0.0.40
codegen_flags: <defaults>
</compile_context>

<pallas_src>
import jax
import jax.numpy as jnp
from jax.experimental import pallas as pl
from jax.experimental.pallas import tpu as pltpu

MARGIN = 0.1                     # CosineEmbeddingLoss margin
EPS = 1e-12                      # eps on squared norms (matches reference below)
TARGET_STREAM_BYTES = 4 << 20    # ~4 MiB of streamed input per grid step


def _vmem_capacity_bytes():
    try:
        return int(pltpu.get_tpu_info().vmem_capacity_bytes)
    except Exception:
        return 64 << 20          # conservative fallback (v7x-sized)


def _derive_tile_rows(n, row_bytes, max_tile_rows=None):
    """Rows per grid step: stream-target-sized, capped by a per-gen VMEM budget."""
    vmem_cap = _vmem_capacity_bytes()
    # Double-buffered input windows must fit comfortably inside scoped VMEM.
    input_budget = min(vmem_cap // 4, 24 << 20)
    tile = min(TARGET_STREAM_BYTES // row_bytes, input_budget // (2 * row_bytes))
    tile = max(int(tile), 8)
    if max_tile_rows is not None:
        tile = min(tile, int(max_tile_rows))
    if tile >= n:
        return n                                  # single full-extent block
    tile = max((tile // 16) * 16, 8)              # sublane multiple (bf16-safe)
    return tile


def _make_mtl_kernel(n_rows, tile_n, n_classes, tiles_per_shard):
    def kernel(x1_ref, x2_ref, y_ref, l1_ref, l2_ref, tgt_ref,
               out_ref, ir_acc, le_acc):
        s = pl.program_id(0)          # shard (parallel -> one per TensorCore on v7x)
        i = pl.program_id(1)          # batch tile within the shard (reduction)

        @pl.when(i == 0)
        def _init():
            ir_acc[...] = jnp.zeros_like(ir_acc)
            le_acc[...] = jnp.zeros_like(le_acc)

        # Row-validity mask (handles ragged last tile AND fully-padded shard tiles;
        # select-based masking is NaN/Inf safe for garbage rows).
        base = (s * tiles_per_shard + i) * tile_n
        row = jax.lax.broadcasted_iota(jnp.int32, (tile_n, 1), 0) + base
        valid = row < n_rows                                         # (T, 1) bool

        # ---------------- IR: CosineEmbeddingLoss(margin=0.1) partial sum ------
        x1 = x1_ref[...].astype(jnp.float32)                         # (T, D)
        x2 = x2_ref[...].astype(jnp.float32)
        y = y_ref[...].astype(jnp.float32)                           # (T, 1)
        dot = jnp.sum(x1 * x2, axis=-1, keepdims=True)
        m1 = jnp.sum(x1 * x1, axis=-1, keepdims=True) + EPS
        m2 = jnp.sum(x2 * x2, axis=-1, keepdims=True) + EPS
        cos = dot * jax.lax.rsqrt(m1 * m2)                           # 1 EUP rsqrt
        per_ir = jnp.where(y > 0.0, 1.0 - cos, jnp.maximum(cos - MARGIN, 0.0))
        per_ir = jnp.where(valid, per_ir, 0.0)
        ir_acc[...] += jnp.sum(per_ir, axis=0, keepdims=True)        # (1, 1)

        # ---------------- LE: CE(logits1,tgt) + CE(logits2,tgt) partial sum ----
        # Class iota / target mask built ONCE per body and reused by both heads
        # (no (2T, C) concat copies, no doubled iota).
        cls = jax.lax.broadcasted_iota(jnp.int32, (tile_n, n_classes), 1)
        tgt_mask = cls == tgt_ref[...]                               # (T, C) bool

        # TODO(synk): out-of-range / negative class indices silently contribute
        # picked=0 (PyTorch cross_entropy would raise); no ignore_index support.
        def ce_rows(l_ref):
            logits = l_ref[...].astype(jnp.float32)                  # (T, C)
            z = logits - jnp.max(logits, axis=-1, keepdims=True)
            lse = jnp.log(jnp.sum(jnp.exp(z), axis=-1, keepdims=True))
            picked = jnp.sum(jnp.where(tgt_mask, z, 0.0), axis=-1, keepdims=True)
            return jnp.where(valid, lse - picked, 0.0)               # (T, 1)

        per_le = ce_rows(l1_ref) + ce_rows(l2_ref)
        le_acc[...] += jnp.sum(per_le, axis=0, keepdims=True)        # (1, 1)

        # ---------------- finalize: emit this shard's partial sums -------------
        @pl.when(i == tiles_per_shard - 1)
        def _fin():
            out_ref[...] = jnp.concatenate([ir_acc[...], le_acc[...]], axis=0)  # (2,1)

    return kernel


def mtl_loss_forward(output, target, log_vars, mml_emp, *,
                     input_dtype=None, max_tile_rows=None):
    """Fused MTLLoss forward.  input_dtype=jnp.bfloat16 streams the big inputs as
    bf16 in HBM (bandwidth win); compute/accumulation stay f32 in-kernel."""
    x1, x2 = output['ir']
    l1, l2 = output['le']
    if input_dtype is not None:
        x1, x2 = x1.astype(input_dtype), x2.astype(input_dtype)
        l1, l2 = l1.astype(input_dtype), l2.astype(input_dtype)
    y = target['ir'].reshape(-1, 1).astype(jnp.float32)
    tgt = target['le'].reshape(-1, 1).astype(jnp.int32)

    n, d = x1.shape
    c = l1.shape[-1]

    itemsize = x1.dtype.itemsize
    row_bytes = (2 * d + 2 * c) * itemsize + 4 + 4     # big inputs + y(f32) + tgt(i32)
    tile_n = _derive_tile_rows(n, row_bytes, max_tile_rows)

    total_tiles = pl.cdiv(n, tile_n)
    # Dual-TC sharding (v7x); on 1-TC chips the parallel axis is a cheap 2-iter loop.
    n_shards = 2 if total_tiles >= 2 else 1
    tiles_per_shard = pl.cdiv(total_tiles, n_shards)
    grid = (n_shards, tiles_per_shard)

    def row_idx(s, i):
        # Clamp so a fully-out-of-range shard tile still DMAs in-bounds data
        # (its rows are then masked to zero inside the kernel).
        return (jnp.minimum(s * tiles_per_shard + i, total_tiles - 1), 0)

    def row_spec(cols):
        return pl.BlockSpec((tile_n, cols), row_idx)

    kernel = _make_mtl_kernel(n, tile_n, c, tiles_per_shard)

    vmem_cap = _vmem_capacity_bytes()
    vmem_limit = int(min(vmem_cap * 3 // 4, 96 << 20))

    partials = pl.pallas_call(
        kernel,
        out_shape=jax.ShapeDtypeStruct((n_shards, 2, 1), jnp.float32),
        grid_spec=pltpu.PrefetchScalarGridSpec(
            num_scalar_prefetch=0,
            grid=grid,
            in_specs=[
                row_spec(d),   # x1
                row_spec(d),   # x2
                row_spec(1),   # ir target (+1/-1)
                row_spec(c),   # logits head 1
                row_spec(c),   # logits head 2
                row_spec(1),   # le target (class idx)
            ],
            out_specs=pl.BlockSpec((None, 2, 1), lambda s, i: (s, 0, 0)),
            scratch_shapes=[pltpu.VMEM((1, 1), jnp.float32),   # ir partial sum
                            pltpu.VMEM((1, 1), jnp.float32)],  # le partial sum
        ),
        compiler_params=pltpu.CompilerParams(
            dimension_semantics=("parallel", "arbitrary"),
            vmem_limit_bytes=vmem_limit),
    )(x1, x2, y, l1, l2, tgt)

    # Tiny 2-element uncertainty-weighting epilogue (per perf review, done in JAX).
    task = jnp.sum(partials.reshape(n_shards, 2), axis=0) / n        # [ir_mean, le_mean]
    lv = log_vars.reshape(-1).astype(jnp.float32)
    emp = mml_emp.reshape(-1).astype(jnp.float32)
    # stds = sqrt(exp(lv)); 1/((emp+1)*stds^2) == exp(-lv)/(emp+1); log(stds) == 0.5*lv
    losses = jnp.exp(-lv) / (emp + 1.0) * task + 0.5 * lv
    return {'ir': losses[0], 'le': losses[1], 'mtl': jnp.mean(losses)}


# ----------------------------------------------------------------------------
# Pure-JAX reference (mirrors the PyTorch module) for numerical checks
# ----------------------------------------------------------------------------
def _reference(output, target, log_vars, mml_emp):
    x1, x2, y = output['ir'][0], output['ir'][1], target['ir'][:, 0]
    dot = jnp.sum(x1 * x2, -1)
    cos = dot / jnp.sqrt((jnp.sum(x1 * x1, -1) + EPS) * (jnp.sum(x2 * x2, -1) + EPS))
    ir = jnp.mean(jnp.where(y > 0, 1.0 - cos, jnp.maximum(cos - MARGIN, 0.0)))

    def ce(logits, t):
        ls = jax.nn.log_softmax(logits, axis=-1)
        return -jnp.mean(jnp.take_along_axis(ls, t, axis=-1))

    le = ce(output['le'][0], target['le']) + ce(output['le'][1], target['le'])

    task = jnp.stack([ir, le])
    stds = jnp.sqrt(jnp.exp(log_vars))
    weights = 1.0 / ((mml_emp + 1.0) * stds ** 2)
    losses = weights * task + jnp.log(stds)
    return {'ir': losses[0], 'le': losses[1], 'mtl': losses.mean()}


def _make_inputs(key, n, d, c):
    k1, k2, k3, k4, k5, k6 = jax.random.split(key, 6)
    ir0 = jax.random.normal(k1, (n, d), jnp.float32)
    ir1 = jax.random.normal(k2, (n, d), jnp.float32)
    ir_tgt = jnp.where(jax.random.bernoulli(k3, 0.5, (n, 1)), 1.0, -1.0).astype(jnp.float32)
    le0 = jax.random.normal(k4, (n, c), jnp.float32)
    le1 = jax.random.normal(k5, (n, c), jnp.float32)
    le_tgt = jax.random.randint(k6, (n, 1), 0, c, jnp.int32)
    return {'ir': (ir0, ir1), 'le': (le0, le1)}, {'ir': ir_tgt, 'le': le_tgt}


if __name__ == "__main__":
    key = jax.random.PRNGKey(0)
    k_small, k_big = jax.random.split(key)

    # --- small case (matches module defaults: log_vars zero-init) -----------
    N, D, C = 8, 32, 16
    output, target = _make_inputs(k_small, N, D, C)
    log_vars = jnp.zeros((2,), jnp.float32)          # nn.Parameter(torch.zeros(2))
    mml_emp = jnp.array([1.0, 0.0], jnp.float32)     # torch.Tensor([True, False])

    result = mtl_loss_forward(output, target, log_vars, mml_emp)
    result = jax.tree_util.tree_map(jax.block_until_ready, result)
    ref = _reference(output, target, log_vars, mml_emp)
    for k in ('ir', 'le', 'mtl'):
        assert jnp.allclose(result[k], ref[k], atol=1e-5, rtol=1e-5), (k, result[k], ref[k])

    # --- larger ragged case: forces a small tile to exercise the 2-shard grid,
    #     the ragged last tile, and the clamped fully-padded shard tile ---------
    N2 = 600
    output2, target2 = _make_inputs(k_big, N2, D, C)
    log_vars2 = jnp.array([0.3, -0.2], jnp.float32)
    result2 = mtl_loss_forward(output2, target2, log_vars2, mml_emp, max_tile_rows=128)
    result2 = jax.tree_util.tree_map(jax.block_until_ready, result2)
    ref2 = _reference(output2, target2, log_vars2, mml_emp)
    for k in ('ir', 'le', 'mtl'):
        assert jnp.allclose(result2[k], ref2[k], atol=1e-5, rtol=1e-5), (k, result2[k], ref2[k])

    # --- bf16-in-HBM path (bandwidth-bound win; f32 compute in-kernel) -------
    result3 = mtl_loss_forward(output2, target2, log_vars2, mml_emp,
                               input_dtype=jnp.bfloat16)
    result3 = jax.tree_util.tree_map(jax.block_until_ready, result3)
    for k in ('ir', 'le', 'mtl'):
        assert jnp.allclose(result3[k], ref2[k], atol=5e-2, rtol=5e-2), (k, result3[k], ref2[k])

    print("KERNEL_OK")
</pallas_src>

<mosaic_0001>
module attributes {stable_mosaic.version = 11 : i64} {
  func.func @kernel(%arg0: i32, %arg1: i32, %arg2: memref<8x32xf32, #tpu.memory_space<vmem>>, %arg3: memref<8x32xf32, #tpu.memory_space<vmem>>, %arg4: memref<8x1xf32, #tpu.memory_space<vmem>>, %arg5: memref<8x16xf32, #tpu.memory_space<vmem>>, %arg6: memref<8x16xf32, #tpu.memory_space<vmem>>, %arg7: memref<8x1xi32, #tpu.memory_space<vmem>>, %arg8: memref<1x2x1xf32, #tpu.memory_space<vmem>>, %arg9: memref<1x1xf32, #tpu.memory_space<vmem>>, %arg10: memref<1x1xf32, #tpu.memory_space<vmem>>) attributes {dimension_semantics = [#tpu.dimension_semantics<parallel>, #tpu.dimension_semantics<arbitrary>], iteration_bounds = array<i64: 1, 1>, scalar_prefetch = 0 : i64, scratch_operands = 2 : i64, tpu.core_type = #tpu.core_type<tc>, window_params = [{transform_indices = @transform_0, window_bounds = array<i64: 8, 32>}, {transform_indices = @transform_1, window_bounds = array<i64: 8, 32>}, {transform_indices = @transform_2, window_bounds = array<i64: 8, 1>}, {transform_indices = @transform_3, window_bounds = array<i64: 8, 16>}, {transform_indices = @transform_4, window_bounds = array<i64: 8, 16>}, {transform_indices = @transform_5, window_bounds = array<i64: 8, 1>}, {transform_indices = @transform_6, window_bounds = array<i64: 1, 2, 1>}]} {
    %c0_i32 = arith.constant 0 : i32
    %0 = arith.cmpi eq, %arg1, %c0_i32 : i32
    %1 = arith.extui %0 : i1 to i32
    %c0_i32_0 = arith.constant 0 : i32
    %2 = arith.cmpi ne, %1, %c0_i32_0 : i32
    scf.if %2 {
      %cst_44 = arith.constant 0.000000e+00 : f32
      %91 = vector.broadcast %cst_44 : f32 to vector<1x1xf32>
      %c0_45 = arith.constant 0 : index
      %c0_46 = arith.constant 0 : index
      %92 = vector.load %arg9[%c0_45, %c0_46] : memref<1x1xf32, #tpu.memory_space<vmem>>, vector<1x1xf32>
      tpu.vector_store %arg9[%c0_45, %c0_46], %91 {strides = array<i32>} : memref<1x1xf32, #tpu.memory_space<vmem>>, vector<1x1xf32>,
      %cst_47 = arith.constant 0.000000e+00 : f32
      %93 = vector.broadcast %cst_47 : f32 to vector<1x1xf32>
      %c0_48 = arith.constant 0 : index
      %c0_49 = arith.constant 0 : index
      %94 = vector.load %arg10[%c0_48, %c0_49] : memref<1x1xf32, #tpu.memory_space<vmem>>, vector<1x1xf32>
      tpu.vector_store %arg10[%c0_48, %c0_49], %93 {strides = array<i32>} : memref<1x1xf32, #tpu.memory_space<vmem>>, vector<1x1xf32>,
    } else {
    }
    %c1_i32 = arith.constant 1 : i32
    %3 = arith.muli %arg0, %c1_i32 : i32
    %4 = arith.addi %3, %arg1 : i32
    %c8_i32 = arith.constant 8 : i32
    %5 = arith.muli %4, %c8_i32 : i32
    %6 = tpu.iota {dimensions = array<i32: 0>} : vector<8x1xi32>
    %7 = vector.broadcast %5 : i32 to vector<8x1xi32>
    %8 = arith.addi %6, %7 : vector<8x1xi32>
    %c8_i32_1 = arith.constant 8 : i32
    %9 = vector.broadcast %c8_i32_1 : i32 to vector<8x1xi32>
    %10 = arith.cmpi slt, %8, %9 : vector<8x1xi32>
    %c0 = arith.constant 0 : index
    %c0_2 = arith.constant 0 : index
    %11 = vector.load %arg2[%c0, %c0_2] : memref<8x32xf32, #tpu.memory_space<vmem>>, vector<8x32xf32>
    %c0_3 = arith.constant 0 : index
    %c0_4 = arith.constant 0 : index
    %12 = vector.load %arg3[%c0_3, %c0_4] : memref<8x32xf32, #tpu.memory_space<vmem>>, vector<8x32xf32>
    %c0_5 = arith.constant 0 : index
    %c0_6 = arith.constant 0 : index
    %13 = vector.load %arg4[%c0_5, %c0_6] : memref<8x1xf32, #tpu.memory_space<vmem>>, vector<8x1xf32>
    %14 = arith.mulf %11, %12 : vector<8x32xf32>
    %cst = arith.constant dense<0.000000e+00> : vector<8xf32>
    %15 = vector.multi_reduction <add>, %14, %cst [1] : vector<8x32xf32> to vector<8xf32>
    %16 = vector.shape_cast %15 : vector<8xf32> to vector<8x1xf32>
    %17 = arith.mulf %11, %11 : vector<8x32xf32>
    %cst_7 = arith.constant dense<0.000000e+00> : vector<8xf32>
    %18 = vector.multi_reduction <add>, %17, %cst_7 [1] : vector<8x32xf32> to vector<8xf32>
    %19 = vector.shape_cast %18 : vector<8xf32> to vector<8x1xf32>
    %cst_8 = arith.constant 9.99999996E-13 : f32
    %20 = vector.broadcast %cst_8 : f32 to vector<8x1xf32>
    %21 = arith.addf %19, %20 : vector<8x1xf32>
    %22 = arith.mulf %12, %12 : vector<8x32xf32>
    %cst_9 = arith.constant dense<0.000000e+00> : vector<8xf32>
    %23 = vector.multi_reduction <add>, %22, %cst_9 [1] : vector<8x32xf32> to vector<8xf32>
    %24 = vector.shape_cast %23 : vector<8xf32> to vector<8x1xf32>
    %cst_10 = arith.constant 9.99999996E-13 : f32
    %25 = vector.broadcast %cst_10 : f32 to vector<8x1xf32>
    %26 = arith.addf %24, %25 : vector<8x1xf32>
    %27 = arith.mulf %21, %26 : vector<8x1xf32>
    %28 = math.rsqrt %27 : vector<8x1xf32>
    %29 = arith.mulf %16, %28 : vector<8x1xf32>
    %cst_11 = arith.constant 0.000000e+00 : f32
    %30 = vector.broadcast %cst_11 : f32 to vector<8x1xf32>
    %31 = arith.cmpf ogt, %13, %30 : vector<8x1xf32>
    %cst_12 = arith.constant 1.000000e+00 : f32
    %32 = vector.broadcast %cst_12 : f32 to vector<8x1xf32>
    %33 = arith.subf %32, %29 : vector<8x1xf32>
    %cst_13 = arith.constant 1.000000e-01 : f32
    %34 = vector.broadcast %cst_13 : f32 to vector<8x1xf32>
    %35 = arith.subf %29, %34 : vector<8x1xf32>
    %cst_14 = arith.constant 0.000000e+00 : f32
    %36 = vector.broadcast %cst_14 : f32 to vector<8x1xf32>
    %37 = arith.maximumf %35, %36 : vector<8x1xf32>
    %38 = arith.select %31, %33, %37 : vector<8x1xi1>, vector<8x1xf32>
    %cst_15 = arith.constant 0.000000e+00 : f32
    %39 = vector.broadcast %cst_15 : f32 to vector<8x1xf32>
    %40 = arith.select %10, %38, %39 : vector<8x1xi1>, vector<8x1xf32>
    %c0_16 = arith.constant 0 : index
    %c0_17 = arith.constant 0 : index
    %41 = vector.load %arg9[%c0_16, %c0_17] : memref<1x1xf32, #tpu.memory_space<vmem>>, vector<1x1xf32>
    %cst_18 = arith.constant dense<0.000000e+00> : vector<1xf32>
    %42 = vector.multi_reduction <add>, %40, %cst_18 [0] : vector<8x1xf32> to vector<1xf32>
    %43 = vector.shape_cast %42 : vector<1xf32> to vector<1x1xf32>
    %44 = arith.addf %41, %43 : vector<1x1xf32>
    %c0_19 = arith.constant 0 : index
    %c0_20 = arith.constant 0 : index
    %45 = vector.load %arg9[%c0_19, %c0_20] : memref<1x1xf32, #tpu.memory_space<vmem>>, vector<1x1xf32>
    tpu.vector_store %arg9[%c0_19, %c0_20], %44 {strides = array<i32>} : memref<1x1xf32, #tpu.memory_space<vmem>>, vector<1x1xf32>,
    %46 = tpu.iota {dimensions = array<i32: 1>} : vector<8x16xi32>
    %c0_21 = arith.constant 0 : index
    %c0_22 = arith.constant 0 : index
    %47 = vector.load %arg7[%c0_21, %c0_22] : memref<8x1xi32, #tpu.memory_space<vmem>>, vector<8x1xi32>
    %48 = vector.broadcast %47 : vector<8x1xi32> to vector<8x16xi32>
    %49 = arith.cmpi eq, %46, %48 : vector<8x16xi32>
    %c0_23 = arith.constant 0 : index
    %c0_24 = arith.constant 0 : index
    %50 = vector.load %arg5[%c0_23, %c0_24] : memref<8x16xf32, #tpu.memory_space<vmem>>, vector<8x16xf32>
    %cst_25 = arith.constant dense<0xFF800000> : vector<8xf32>
    %51 = vector.multi_reduction <maximumf>, %50, %cst_25 [1] : vector<8x16xf32> to vector<8xf32>
    %52 = vector.shape_cast %51 : vector<8xf32> to vector<8x1xf32>
    %53 = vector.broadcast %52 : vector<8x1xf32> to vector<8x16xf32>
    %54 = arith.subf %50, %53 : vector<8x16xf32>
    %55 = math.exp %54 : vector<8x16xf32>
    %cst_26 = arith.constant dense<0.000000e+00> : vector<8xf32>
    %56 = vector.multi_reduction <add>, %55, %cst_26 [1] : vector<8x16xf32> to vector<8xf32>
    %57 = vector.shape_cast %56 : vector<8xf32> to vector<8x1xf32>
    %58 = math.log %57 : vector<8x1xf32>
    %cst_27 = arith.constant 0.000000e+00 : f32
    %59 = vector.broadcast %cst_27 : f32 to vector<8x16xf32>
    %60 = arith.select %49, %54, %59 : vector<8x16xi1>, vector<8x16xf32>
    %cst_28 = arith.constant dense<0.000000e+00> : vector<8xf32>
    %61 = vector.multi_reduction <add>, %60, %cst_28 [1] : vector<8x16xf32> to vector<8xf32>
    %62 = vector.shape_cast %61 : vector<8xf32> to vector<8x1xf32>
    %63 = arith.subf %58, %62 : vector<8x1xf32>
    %cst_29 = arith.constant 0.000000e+00 : f32
    %64 = vector.broadcast %cst_29 : f32 to vector<8x1xf32>
    %65 = arith.select %10, %63, %64 : vector<8x1xi1>, vector<8x1xf32>
    %c0_30 = arith.constant 0 : index
    %c0_31 = arith.constant 0 : index
    %66 = vector.load %arg6[%c0_30, %c0_31] : memref<8x16xf32, #tpu.memory_space<vmem>>, vector<8x16xf32>
    %cst_32 = arith.constant dense<0xFF800000> : vector<8xf32>
    %67 = vector.multi_reduction <maximumf>, %66, %cst_32 [1] : vector<8x16xf32> to vector<8xf32>
    %68 = vector.shape_cast %67 : vector<8xf32> to vector<8x1xf32>
    %69 = vector.broadcast %68 : vector<8x1xf32> to vector<8x16xf32>
    %70 = arith.subf %66, %69 : vector<8x16xf32>
    %71 = math.exp %70 : vector<8x16xf32>
    %cst_33 = arith.constant dense<0.000000e+00> : vector<8xf32>
    %72 = vector.multi_reduction <add>, %71, %cst_33 [1] : vector<8x16xf32> to vector<8xf32>
    %73 = vector.shape_cast %72 : vector<8xf32> to vector<8x1xf32>
    %74 = math.log %73 : vector<8x1xf32>
    %cst_34 = arith.constant 0.000000e+00 : f32
    %75 = vector.broadcast %cst_34 : f32 to vector<8x16xf32>
    %76 = arith.select %49, %70, %75 : vector<8x16xi1>, vector<8x16xf32>
    %cst_35 = arith.constant dense<0.000000e+00> : vector<8xf32>
    %77 = vector.multi_reduction <add>, %76, %cst_35 [1] : vector<8x16xf32> to vector<8xf32>
    %78 = vector.shape_cast %77 : vector<8xf32> to vector<8x1xf32>
    %79 = arith.subf %74, %78 : vector<8x1xf32>
    %cst_36 = arith.constant 0.000000e+00 : f32
    %80 = vector.broadcast %cst_36 : f32 to vector<8x1xf32>
    %81 = arith.select %10, %79, %80 : vector<8x1xi1>, vector<8x1xf32>
    %82 = arith.addf %65, %81 : vector<8x1xf32>
    %c0_37 = arith.constant 0 : index
    %c0_38 = arith.constant 0 : index
    %83 = vector.load %arg10[%c0_37, %c0_38] : memref<1x1xf32, #tpu.memory_space<vmem>>, vector<1x1xf32>
    %cst_39 = arith.constant dense<0.000000e+00> : vector<1xf32>
    %84 = vector.multi_reduction <add>, %82, %cst_39 [0] : vector<8x1xf32> to vector<1xf32>
    %85 = vector.shape_cast %84 : vector<1xf32> to vector<1x1xf32>
    %86 = arith.addf %83, %85 : vector<1x1xf32>
    %c0_40 = arith.constant 0 : index
    %c0_41 = arith.constant 0 : index
    %87 = vector.load %arg10[%c0_40, %c0_41] : memref<1x1xf32, #tpu.memory_space<vmem>>, vector<1x1xf32>
    tpu.vector_store %arg10[%c0_40, %c0_41], %86 {strides = array<i32>} : memref<1x1xf32, #tpu.memory_space<vmem>>, vector<1x1xf32>,
    %c0_i32_42 = arith.constant 0 : i32
    %88 = arith.cmpi eq, %arg1, %c0_i32_42 : i32
    %89 = arith.extui %88 : i1 to i32
    %c0_i32_43 = arith.constant 0 : i32
    %90 = arith.cmpi ne, %89, %c0_i32_43 : i32
    scf.if %90 {
      %c0_44 = arith.constant 0 : index
      %c0_45 = arith.constant 0 : index
      %91 = vector.load %arg9[%c0_44, %c0_45] : memref<1x1xf32, #tpu.memory_space<vmem>>, vector<1x1xf32>
      %c0_46 = arith.constant 0 : index
      %c0_47 = arith.constant 0 : index
      %92 = vector.load %arg10[%c0_46, %c0_47] : memref<1x1xf32, #tpu.memory_space<vmem>>, vector<1x1xf32>
      %93 = tpu.concatenate %91, %92 in 0 : vector<1x1xf32>, vector<1x1xf32> -> vector<2x1xf32>
      %c0_48 = arith.constant 0 : index
      %c0_49 = arith.constant 0 : index
      %c0_50 = arith.constant 0 : index
      %94 = vector.load %arg8[%c0_48, %c0_49, %c0_50] : memref<1x2x1xf32, #tpu.memory_space<vmem>>, vector<1x2x1xf32>
      %95 = vector.shape_cast %94 : vector<1x2x1xf32> to vector<2x1xf32>
      %96 = vector.shape_cast %93 : vector<2x1xf32> to vector<1x2x1xf32>
      tpu.vector_store %arg8[%c0_48, %c0_49, %c0_50], %96 {strides = array<i32>} : memref<1x2x1xf32, #tpu.memory_space<vmem>>, vector<1x2x1xf32>,
    } else {
    }
    return
  }
  func.func @transform_0(%arg0: i32, %arg1: i32) -> (i32, i32) {
    %c1_i32 = arith.constant 1 : i32
    %0 = arith.muli %arg0, %c1_i32 : i32
    %1 = arith.addi %0, %arg1 : i32
    %c0_i32 = arith.constant 0 : i32
    %2 = arith.minsi %1, %c0_i32 : i32
    %c0_i32_0 = arith.constant 0 : i32
    %c0_i32_1 = arith.constant 0 : i32
    return %2, %c0_i32_0 : i32, i32
  }
  func.func @transform_1(%arg0: i32, %arg1: i32) -> (i32, i32) {
    %c1_i32 = arith.constant 1 : i32
    %0 = arith.muli %arg0, %c1_i32 : i32
    %1 = arith.addi %0, %arg1 : i32
    %c0_i32 = arith.constant 0 : i32
    %2 = arith.minsi %1, %c0_i32 : i32
    %c0_i32_0 = arith.constant 0 : i32
    %c0_i32_1 = arith.constant 0 : i32
    return %2, %c0_i32_0 : i32, i32
  }
  func.func @transform_2(%arg0: i32, %arg1: i32) -> (i32, i32) {
    %c1_i32 = arith.constant 1 : i32
    %0 = arith.muli %arg0, %c1_i32 : i32
    %1 = arith.addi %0, %arg1 : i32
    %c0_i32 = arith.constant 0 : i32
    %2 = arith.minsi %1, %c0_i32 : i32
    %c0_i32_0 = arith.constant 0 : i32
    %c0_i32_1 = arith.constant 0 : i32
    return %2, %c0_i32_0 : i32, i32
  }
  func.func @transform_3(%arg0: i32, %arg1: i32) -> (i32, i32) {
    %c1_i32 = arith.constant 1 : i32
    %0 = arith.muli %arg0, %c1_i32 : i32
    %1 = arith.addi %0, %arg1 : i32
    %c0_i32 = arith.constant 0 : i32
    %2 = arith.minsi %1, %c0_i32 : i32
    %c0_i32_0 = arith.constant 0 : i32
    %c0_i32_1 = arith.constant 0 : i32
    return %2, %c0_i32_0 : i32, i32
  }
  func.func @transform_4(%arg0: i32, %arg1: i32) -> (i32, i32) {
    %c1_i32 = arith.constant 1 : i32
    %0 = arith.muli %arg0, %c1_i32 : i32
    %1 = arith.addi %0, %arg1 : i32
    %c0_i32 = arith.constant 0 : i32
    %2 = arith.minsi %1, %c0_i32 : i32
    %c0_i32_0 = arith.constant 0 : i32
    %c0_i32_1 = arith.constant 0 : i32
    return %2, %c0_i32_0 : i32, i32
  }
  func.func @transform_5(%arg0: i32, %arg1: i32) -> (i32, i32) {
    %c1_i32 = arith.constant 1 : i32
    %0 = arith.muli %arg0, %c1_i32 : i32
    %1 = arith.addi %0, %arg1 : i32
    %c0_i32 = arith.constant 0 : i32
    %2 = arith.minsi %1, %c0_i32 : i32
    %c0_i32_0 = arith.constant 0 : i32
    %c0_i32_1 = arith.constant 0 : i32
    return %2, %c0_i32_0 : i32, i32
  }
  func.func @transform_6(%arg0: i32, %arg1: i32) -> (i32, i32, i32) {
    %c0_i32 = arith.constant 0 : i32
    %c0_i32_0 = arith.constant 0 : i32
    %c0_i32_1 = arith.constant 0 : i32
    return %arg0, %c0_i32, %c0_i32_0 : i32, i32, i32
  }
}

</mosaic_0001>

<llo_original>
// kernel: tpu_custom_call.1
$region0: #{tpu_custom_call.1}
  #allocation0 [shape = 'u32[]', space=smem, size = 0x4, offset = 0x4, fixed_abs, tag = 'smem constant byte address 0x4 - core index']
  #allocation1 [shape = 'u32[144,128]{1,0:T(1,128)}', space=vmem, size = 0x12000, scoped, tag = 'internal scratch']
  #allocation2 [shape = 'f32[1,1]{1,0:T(1,128)}', space=vmem, size = 0x200, scoped, tag = 'scratch operand']
  #allocation3 [shape = 'f32[1,1]{1,0:T(1,128)}', space=vmem, size = 0x200, scoped, tag = 'scratch operand']
  %s0 = inlined_call_operand.vmem [shape: f32[8,32], index: 0, kind: input, shape index: {}]
  %s1 = inlined_call_operand.vmem [shape: f32[8,32], index: 1, kind: input, shape index: {}]
  %s2 = inlined_call_operand.vmem [shape: f32[8,1], index: 2, kind: input, shape index: {}]
  %s3 = inlined_call_operand.vmem [shape: f32[8,16], index: 3, kind: input, shape index: {}]
  %s4 = inlined_call_operand.vmem [shape: f32[8,16], index: 4, kind: input, shape index: {}]
  %s5 = inlined_call_operand.vmem [shape: s32[8,1], index: 5, kind: input, shape index: {}]
  %s6 = inlined_call_operand.vmem [shape: f32[1,2,1], index: 6, kind: output, shape index: {}]
  %s7 = sld [smem:[#allocation0]]
  $region42: #{tpu_custom_call.1} parent=0
    _
  %s9 = ssub.s32 1, %s7
  %s10 = scalar_select 0, %s9, %s7
  // Predicated region
  $region2: #{tpu_custom_call.1} parent=0 // pred_check
    _
  $region3: #{tpu_custom_call.1} parent=0 // pred_check_branch
    %12 = sbr.rel (0) target = $region5
  $region4: #{tpu_custom_call.1} parent=0 // pred_region
    %s13 = sadd.s32 0, 0
    %p14 = scmp.lt.s32.totalorder %s13, 0
    %s15 = scalar_select %p14, %s13, 0
    %p16 = scmp.lt.s32.totalorder %s15, 0
    %s17 = scalar_select %p16, %s15, 0
    %s18 = smul.addr %s17, 8
    %s19 = scalar_lea.vmem %s0, %s18
    %s20 = sadd.s32 0, 0
    %p21 = scmp.lt.s32.totalorder %s20, 0
    %s22 = scalar_select %p21, %s20, 0
  $region5: #{tpu_custom_call.1} parent=0 // pred_fallthru
    _
  // Predicated region
  $region6: #{tpu_custom_call.1} parent=0 // pred_check
    _
  $region7: #{tpu_custom_call.1} parent=0 // pred_check_branch
    %24 = sbr.rel (0) target = $region9
  $region8: #{tpu_custom_call.1} parent=0 // pred_region
    %s25 = sadd.s32 0, 0
    %p26 = scmp.lt.s32.totalorder %s25, 0
    %s27 = scalar_select %p26, %s25, 0
    %p28 = scmp.lt.s32.totalorder %s27, 0
    %s29 = scalar_select %p28, %s27, 0
    %s30 = smul.addr %s29, 8
    %s31 = scalar_lea.vmem %s1, %s30
    %s32 = sadd.s32 0, 0
    %p33 = scmp.lt.s32.totalorder %s32, 0
    %s34 = scalar_select %p33, %s32, 0
  $region9: #{tpu_custom_call.1} parent=0 // pred_fallthru
    _
  // Predicated region
  $region10: #{tpu_custom_call.1} parent=0 // pred_check
    _
  $region11: #{tpu_custom_call.1} parent=0 // pred_check_branch
    %36 = sbr.rel (0) target = $region13
  $region12: #{tpu_custom_call.1} parent=0 // pred_region
    %s37 = sadd.s32 0, 0
    %p38 = scmp.lt.s32.totalorder %s37, 0
    %s39 = scalar_select %p38, %s37, 0
    %p40 = scmp.lt.s32.totalorder %s39, 0
    %s41 = scalar_select %p40, %s39, 0
    %s42 = smul.addr %s41, 8
    %s43 = scalar_lea.vmem %s2, %s42
    %s44 = sadd.s32 0, 0
    %p45 = scmp.lt.s32.totalorder %s44, 0
    %s46 = scalar_select %p45, %s44, 0
  $region13: #{tpu_custom_call.1} parent=0 // pred_fallthru
    _
  // Predicated region
  $region14: #{tpu_custom_call.1} parent=0 // pred_check
    _
  $region15: #{tpu_custom_call.1} parent=0 // pred_check_branch
    %48 = sbr.rel (0) target = $region17
  $region16: #{tpu_custom_call.1} parent=0 // pred_region
    %s49 = sadd.s32 0, 0
    %p50 = scmp.lt.s32.totalorder %s49, 0
    %s51 = scalar_select %p50, %s49, 0
    %p52 = scmp.lt.s32.totalorder %s51, 0
    %s53 = scalar_select %p52, %s51, 0
    %s54 = smul.addr %s53, 8
    %s55 = scalar_lea.vmem %s3, %s54
    %s56 = sadd.s32 0, 0
    %p57 = scmp.lt.s32.totalorder %s56, 0
    %s58 = scalar_select %p57, %s56, 0
  $region17: #{tpu_custom_call.1} parent=0 // pred_fallthru
    _
  // Predicated region
  $region18: #{tpu_custom_call.1} parent=0 // pred_check
    _
  $region19: #{tpu_custom_call.1} parent=0 // pred_check_branch
    %60 = sbr.rel (0) target = $region21
  $region20: #{tpu_custom_call.1} parent=0 // pred_region
    %s61 = sadd.s32 0, 0
    %p62 = scmp.lt.s32.totalorder %s61, 0
    %s63 = scalar_select %p62, %s61, 0
    %p64 = scmp.lt.s32.totalorder %s63, 0
    %s65 = scalar_select %p64, %s63, 0
    %s66 = smul.addr %s65, 8
    %s67 = scalar_lea.vmem %s4, %s66
    %s68 = sadd.s32 0, 0
    %p69 = scmp.lt.s32.totalorder %s68, 0
    %s70 = scalar_select %p69, %s68, 0
  $region21: #{tpu_custom_call.1} parent=0 // pred_fallthru
    _
  // Predicated region
  $region22: #{tpu_custom_call.1} parent=0 // pred_check
    _
  $region23: #{tpu_custom_call.1} parent=0 // pred_check_branch
    %72 = sbr.rel (0) target = $region25
  $region24: #{tpu_custom_call.1} parent=0 // pred_region
    %s73 = sadd.s32 0, 0
    %p74 = scmp.lt.s32.totalorder %s73, 0
    %s75 = scalar_select %p74, %s73, 0
    %p76 = scmp.lt.s32.totalorder %s75, 0
    %s77 = scalar_select %p76, %s75, 0
    %s78 = smul.addr %s77, 8
    %s79 = scalar_lea.vmem %s5, %s78
    %s80 = sadd.s32 0, 0
    %p81 = scmp.lt.s32.totalorder %s80, 0
    %s82 = scalar_select %p81, %s80, 0
  $region25: #{tpu_custom_call.1} parent=0 // pred_fallthru
    _
  %s83 = sadd.s32 0, 0
  %p84 = scmp.lt.s32.totalorder %s83, 0
  %s85 = scalar_select %p84, %s83, 0
  %p86 = scmp.lt.s32.totalorder %s85, 0
  %s87 = scalar_select %p86, %s85, 0
  %s88 = smul.addr %s87, 8
  %s89 = scalar_lea.vmem %s0, %s88
  %s90 = sadd.s32 0, 0
  %p91 = scmp.lt.s32.totalorder %s90, 0
  %s92 = scalar_select %p91, %s90, 0
  %p93 = scmp.lt.s32.totalorder %s92, 0
  %s94 = scalar_select %p93, %s92, 0
  %s95 = smul.addr %s94, 8
  %s96 = scalar_lea.vmem %s1, %s95
  %s97 = sadd.s32 0, 0
  %p98 = scmp.lt.s32.totalorder %s97, 0
  %s99 = scalar_select %p98, %s97, 0
  %p100 = scmp.lt.s32.totalorder %s99, 0
  %s101 = scalar_select %p100, %s99, 0
  %s102 = smul.addr %s101, 8
  %s103 = scalar_lea.vmem %s2, %s102
  %s104 = sadd.s32 0, 0
  %p105 = scmp.lt.s32.totalorder %s104, 0
  %s106 = scalar_select %p105, %s104, 0
  %p107 = scmp.lt.s32.totalorder %s106, 0
  %s108 = scalar_select %p107, %s106, 0
  %s109 = smul.addr %s108, 8
  %s110 = scalar_lea.vmem %s3, %s109
  %s111 = sadd.s32 0, 0
  %p112 = scmp.lt.s32.totalorder %s111, 0
  %s113 = scalar_select %p112, %s111, 0
  %p114 = scmp.lt.s32.totalorder %s113, 0
  %s115 = scalar_select %p114, %s113, 0
  %s116 = smul.addr %s115, 8
  %s117 = scalar_lea.vmem %s4, %s116
  %s118 = sadd.s32 0, 0
  %p119 = scmp.lt.s32.totalorder %s118, 0
  %s120 = scalar_select %p119, %s118, 0
  %p121 = scmp.lt.s32.totalorder %s120, 0
  %s122 = scalar_select %p121, %s120, 0
  %s123 = smul.addr %s122, 8
  %s124 = scalar_lea.vmem %s5, %s123
  %s125 = sadd.s32 0, 0
  %p126 = scmp.lt.s32.totalorder %s125, 0
  %s127 = scalar_select %p126, %s125, 0
  %p128 = scmp.lt.s32.totalorder %s127, 0
  %s129 = scalar_select %p128, %s127, 0
  %s130 = smul.addr %s129, 8
  %s131 = scalar_lea.vmem %s0, %s130
  %s132 = sadd.s32 0, 0
  %p133 = scmp.lt.s32.totalorder %s132, 0
  %s134 = scalar_select %p133, %s132, 0
  %s135 = sadd.s32 0, 0
  %p136 = scmp.lt.s32.totalorder %s135, 0
  %s137 = scalar_select %p136, %s135, 0
  %p138 = scmp.lt.s32.totalorder %s137, 0
  %s139 = scalar_select %p138, %s137, 0
  %s140 = smul.addr %s139, 8
  %s141 = scalar_lea.vmem %s1, %s140
  %s142 = sadd.s32 0, 0
  %p143 = scmp.lt.s32.totalorder %s142, 0
  %s144 = scalar_select %p143, %s142, 0
  %s145 = sadd.s32 0, 0
  %p146 = scmp.lt.s32.totalorder %s145, 0
  %s147 = scalar_select %p146, %s145, 0
  %p148 = scmp.lt.s32.totalorder %s147, 0
  %s149 = scalar_select %p148, %s147, 0
  %s150 = smul.addr %s149, 8
  %s151 = scalar_lea.vmem %s2, %s150
  %s152 = sadd.s32 0, 0
  %p153 = scmp.lt.s32.totalorder %s152, 0
  %s154 = scalar_select %p153, %s152, 0
  %s155 = sadd.s32 0, 0
  %p156 = scmp.lt.s32.totalorder %s155, 0
  %s157 = scalar_select %p156, %s155, 0
  %p158 = scmp.lt.s32.totalorder %s157, 0
  %s159 = scalar_select %p158, %s157, 0
  %s160 = smul.addr %s159, 8
  %s161 = scalar_lea.vmem %s3, %s160
  %s162 = sadd.s32 0, 0
  %p163 = scmp.lt.s32.totalorder %s162, 0
  %s164 = scalar_select %p163, %s162, 0
  %s165 = sadd.s32 0, 0
  %p166 = scmp.lt.s32.totalorder %s165, 0
  %s167 = scalar_select %p166, %s165, 0
  %p168 = scmp.lt.s32.totalorder %s167, 0
  %s169 = scalar_select %p168, %s167, 0
  %s170 = smul.addr %s169, 8
  %s171 = scalar_lea.vmem %s4, %s170
  %s172 = sadd.s32 0, 0
  %p173 = scmp.lt.s32.totalorder %s172, 0
  %s174 = scalar_select %p173, %s172, 0
  %s175 = sadd.s32 0, 0
  %p176 = scmp.lt.s32.totalorder %s175, 0
  %s177 = scalar_select %p176, %s175, 0
  %p178 = scmp.lt.s32.totalorder %s177, 0
  %s179 = scalar_select %p178, %s177, 0
  %s180 = smul.addr %s179, 8
  %s181 = scalar_lea.vmem %s5, %s180
  %s182 = sadd.s32 0, 0
  %p183 = scmp.lt.s32.totalorder %s182, 0
  %s184 = scalar_select %p183, %s182, 0
  %p185 = scmp.eq.s32.totalorder 0, 0
  // Predicated region
  $region26: #{tpu_custom_call.1} parent=0 // pred_check
    %p186 = pneg %p185
  $region27: #{tpu_custom_call.1} parent=0 // pred_check_branch
    %188 = sbr.rel (%p186) target = $region29
  $region28: #{tpu_custom_call.1} parent=0 // pred_region
    %vm189 = vcmask 0
    %190 = vst.msk [vmem:[#allocation2] sm:$0x1] %vm189, 0.0
    %191 = vst.msk [vmem:[#allocation3] sm:$0x1] %vm189, 0.0
  $region29: #{tpu_custom_call.1} parent=0 // pred_fallthru
    _
  %s192 = sadd.s32 0, 0
  %s193 = smul.u32 %s192, 8
  %v194 = vlaneseq
  %v195 = vshrl.u32 %v194, 7
  %v196 = vstv %s193
  %v197 = vadd.s32 %v195, %v196
  %vm198 = vcmp.lt.s32.totalorder %v197, 8
  %v199 = vld [vmem:[%s131] sm:$0xff]
  %v200 = vld [vmem:[%s141] sm:$0xff]
  %v201 = vld [vmem:[%s151] sm:$0xff]
  %v202 = vmul.f32 %v199, %v200
  %vm203 = vcmask 261120
  %v204 = vsel %vm203, %v202, 0.0
  %205 = vadd.xlane.f32.xlu0 %v204
  %v206 = vpop.xlane.xlu0 %205
  %v207 = vmul.f32 %v199, %v199
  %v208 = vsel %vm203, %v207, 0.0
  %209 = vadd.xlane.f32.xlu0 %v208
  %v210 = vpop.xlane.xlu0 %209
  %v211 = vadd.f32 %v210, 1e-12
  %v212 = vmul.f32 %v200, %v200
  %v213 = vsel %vm203, %v212, 0.0
  %214 = vadd.xlane.f32.xlu0 %v213
  %v215 = vpop.xlane.xlu0 %214
  %v216 = vadd.f32 %v215, 1e-12
  %v217 = vmul.f32 %v211, %v216
  %v218 = vrsqrt.pop %v217
  %v219 = vmul.f32 %v206, %v218
  %vm220 = vcmp.gt.f32.partialorder %v201, 0.0
  %v221 = vsub.f32 1.0, %v219
  %v222 = vsub.f32 %v219, 0.1
  %v223 = vmax.f32 %v222, 0.0
  %v224 = vsel %vm220, %v221, %v223
  %v225 = vsel %vm198, %v224, 0.0
  %v226 = vld [vmem:[#allocation2] sm:$0x1]
  %vm227 = vcmask 7168
  %v228 = vsel %vm227, %v225, 0.0
  %v229 = vrot.slane %v228, 4
  %v230 = vadd.f32 %v228, %v229
  %v231 = vrot.slane %v230, 2
  %v232 = vadd.f32 %v230, %v231
  %v233 = vrot.slane %v232, 1
  %v234 = vadd.f32 %v232, %v233
  %v235 = vadd.f32 %v226, %v234
  %vm236 = vcmask 0
  %237 = vst.msk [vmem:[#allocation2] sm:$0x1] %vm236, %v235
  %v238 = vlaneseq
  %v239 = vand.u32 %v238, 127
  %v240 = vld [vmem:[%s181] sm:$0xff]
  %241 = vset.pattern.permute.xlu0 0
  %242 = vperm.xlu0 %241, %v240
  %v243 = vpop.permute.xlu0 %242
  %vm244 = vcmp.eq.s32.totalorder %v239, %v243
  %v245 = vld [vmem:[%s161] sm:$0xff]
  %vm246 = vcmask 130048
  %v247 = vsel %vm246, %v245, -inf
  %248 = vmax.xlane.f32.xlu0 %v247
  %v249 = vpop.xlane.xlu0 %248
  %v250 = vsub.f32 %v245, %v249
  %v251 = vmul.f32 %v250, 1.442695
  %v252 = vpow.pop %v251
  %v253 = vsel %vm246, %v252, 0.0
  %254 = vadd.xlane.f32.xlu0 %v253
  %v255 = vpop.xlane.xlu0 %254
  %v256 = vlog2.pop %v255
  %v257 = vmul.f32 %v256, 0.6931472
  %v258 = vsel %vm244, %v250, 0.0
  %v259 = vsel %vm246, %v258, 0.0
  %260 = vadd.xlane.f32.xlu0 %v259
  %v261 = vpop.xlane.xlu0 %260
  %v262 = vsub.f32 %v257, %v261
  %v263 = vsel %vm198, %v262, 0.0
  %v264 = vld [vmem:[%s171] sm:$0xff]
  %v265 = vsel %vm246, %v264, -inf
  %266 = vmax.xlane.f32.xlu0 %v265
  %v267 = vpop.xlane.xlu0 %266
  %v268 = vsub.f32 %v264, %v267
  %v269 = vmul.f32 %v268, 1.442695
  %v270 = vpow.pop %v269
  %v271 = vsel %vm246, %v270, 0.0
  %272 = vadd.xlane.f32.xlu0 %v271
  %v273 = vpop.xlane.xlu0 %272
  %v274 = vlog2.pop %v273
  %v275 = vmul.f32 %v274, 0.6931472
  %v276 = vsel %vm244, %v268, 0.0
  %v277 = vsel %vm246, %v276, 0.0
  %278 = vadd.xlane.f32.xlu0 %v277
  %v279 = vpop.xlane.xlu0 %278
  %v280 = vsub.f32 %v275, %v279
  %v281 = vsel %vm198, %v280, 0.0
  %v282 = vadd.f32 %v263, %v281
  %v283 = vld [vmem:[#allocation3] sm:$0x1]
  %v284 = vrot.slane %v282, 4
  %v285 = vadd.f32 %v282, %v284
  %v286 = vrot.slane %v285, 2
  %v287 = vadd.f32 %v285, %v286
  %v288 = vrot.slane %v287, 1
  %v289 = vadd.f32 %v287, %v288
  %v290 = vadd.f32 %v283, %v289
  %291 = vst.msk [vmem:[#allocation3] sm:$0x1] %vm236, %v290
  // Predicated region
  $region30: #{tpu_custom_call.1} parent=0 // pred_check
    %p292 = pneg %p185
  $region31: #{tpu_custom_call.1} parent=0 // pred_check_branch
    %294 = sbr.rel (%p292) target = $region33
  $region32: #{tpu_custom_call.1} parent=0 // pred_region
    %v295 = vld [vmem:[#allocation2] sm:$0x1]
    %v296 = vld [vmem:[#allocation3] sm:$0x1]
    %v298 = vlaneseq
    %v299 = vshrl.u32 %v298, 7
    %v300 = vsub.s32 0, %v299
    %v301 = vrot.slane %v296, %v300
    %vm303 = vcmask 1040384
    %v304 = vsel %vm303, %v295, %v301
    %vm305 = vcmask 1024
    %306 = vst.msk [vmem:[%s6] sm:$0x3] %vm305, %v304
  $region33: #{tpu_custom_call.1} parent=0 // pred_fallthru
    _
  // Predicated region
  $region34: #{tpu_custom_call.1} parent=0 // pred_check
    _
  $region35: #{tpu_custom_call.1} parent=0 // pred_check_branch
    %308 = sbr.rel (0) target = $region37
  $region36: #{tpu_custom_call.1} parent=0 // pred_region
    _
  $region37: #{tpu_custom_call.1} parent=0 // pred_fallthru
    _
  // Predicated region
  $region38: #{tpu_custom_call.1} parent=0 // pred_check
    _
  $region39: #{tpu_custom_call.1} parent=0 // pred_check_branch
    %310 = sbr.rel (0) target = $region41
  $region40: #{tpu_custom_call.1} parent=0 // pred_region
    _
  $region41: #{tpu_custom_call.1} parent=0 // pred_fallthru
    _

</llo_original>
